<compile_context>
chip_gen: v6e
topology: v6e:2x2x1
jax: 0.10.0
libtpu: 0.0.40
codegen_flags: <defaults>
</compile_context>

<pallas_src>
import functools

import jax
import jax.numpy as jnp
from jax.experimental import pallas as pl
from jax.experimental.pallas import tpu as pltpu


_LANE = 128            # output last dim padded to a multiple of this (lane-dense stores)
_SUBLANE = 8           # f32 sublane granularity for the row tile
_DEFAULT_TILE_M = 512  # rows per grid step (multiple of 8); fits all VMEM budgets easily
_PALLAS_MIN_WORK = 1_000_000  # below ~1e6 MACs the fixed pallas_call overhead dominates


def _round_up(n, m):
    return ((n + m - 1) // m) * m


def _td_linear_kernel(x_ref, w_ref, b_ref, o_ref):
    # x_ref: (TILE_M, F_in)       -- streamed row tile
    # w_ref: (F_in, F_out_pad)    -- VMEM-resident across the grid
    # b_ref: (1, F_out_pad)       -- VMEM-resident across the grid
    # o_ref: (TILE_M, F_out_pad)  -- lane-dense (F_out_pad % 128 == 0) store
    acc = jnp.dot(x_ref[...], w_ref[...], preferred_element_type=jnp.float32)
    o_ref[...] = (acc + b_ref[...].astype(jnp.float32)).astype(o_ref.dtype)


def _pallas_linear_2d(x2, w, b, tile_m):
    """y2[M, F_out] = x2[M, F_in] @ w[F_in, F_out] + b[1, F_out] via Pallas."""
    M, F_in = x2.shape
    F_out = w.shape[1]

    # Lane-dense output: pad F_out up to a multiple of 128.
    F_out_pad = _round_up(F_out, _LANE)
    # Row tile: multiple of the sublane count, capped at (rounded-up) M.
    tm = min(_round_up(tile_m, _SUBLANE), _round_up(M, _SUBLANE))
    M_pad = _round_up(M, tm)

    if M_pad != M:
        x2 = jnp.pad(x2, ((0, M_pad - M), (0, 0)))
    if F_out_pad != F_out:
        w = jnp.pad(w, ((0, 0), (0, F_out_pad - F_out)))
        b = jnp.pad(b, ((0, 0), (0, F_out_pad - F_out)))

    grid_m = M_pad // tm
    bytes_accessed = 4 * (M_pad * F_in + F_in * F_out_pad + F_out_pad + M_pad * F_out_pad)

    y2 = pl.pallas_call(
        _td_linear_kernel,
        out_shape=jax.ShapeDtypeStruct((M_pad, F_out_pad), x2.dtype),
        grid_spec=pltpu.PrefetchScalarGridSpec(
            num_scalar_prefetch=0,
            grid=(grid_m,),
            in_specs=[
                pl.BlockSpec((tm, F_in), lambda i: (i, 0)),         # streamed x rows
                pl.BlockSpec((F_in, F_out_pad), lambda i: (0, 0)),  # resident weight
                pl.BlockSpec((1, F_out_pad), lambda i: (0, 0)),     # resident bias
            ],
            out_specs=pl.BlockSpec((tm, F_out_pad), lambda i: (i, 0)),
        ),
        compiler_params=pltpu.CompilerParams(
            # Independent row tiles -> shard across TensorCores on v7x;
            # neutral on single-TC v5e / v6e.
            dimension_semantics=("parallel",),
        ),
        cost_estimate=pl.CostEstimate(
            flops=2 * M_pad * F_in * F_out_pad,
            transcendentals=0,
            bytes_accessed=bytes_accessed,
        ),
    )(x2, w, b)

    # Strip the padding (rows and lanes) added for tiling / lane-density.
    return y2[:M, :F_out]


@functools.partial(jax.jit, static_argnames=("tile_m", "force_pallas"))
def time_distributed_linear(x, w, b, *, tile_m=_DEFAULT_TILE_M, force_pallas=False):
    """TimeDistributed(nn.Linear): x[..., F_in] -> y[..., F_out].

    Matches the PyTorch module: leading dims are collapsed, the Linear is
    applied, and the original leading dims are restored.  (For a Linear inner
    module all rank branches of the PyTorch module reduce to this.)
    """
    F_in = x.shape[-1]
    F_out = w.shape[1]
    lead = x.shape[:-1]
    M = 1
    for d in lead:
        M *= d

    x2 = x.reshape(M, F_in)  # TimeDistributed collapse

    # Tiny problems: the fixed pallas_call / per-step overhead dominates, let
    # XLA's fused matmul handle it.  force_pallas=True exercises the kernel
    # regardless of size.
    if not force_pallas and (M * F_in * F_out) < _PALLAS_MIN_WORK:
        y2 = x2 @ w + b
    else:
        y2 = _pallas_linear_2d(x2, w, b, tile_m)

    return y2.reshape(*lead, F_out)  # TimeDistributed re-expand


def _reference(x, w, b):
    y = jnp.einsum("...i,io->...o", x, w, precision=jax.lax.Precision.HIGHEST)
    return y + b


if __name__ == "__main__":
    key = jax.random.PRNGKey(0)
    kx, kw, kb, kx2, kw2, kb2 = jax.random.split(key, 6)

    # Case 1: tiny lstm_test.py-style shape.  Force the Pallas path so the
    # kernel itself is exercised (this size would normally bypass to XLA).
    B, T, F_in, F_out = 2, 8, 32, 64
    bound = 1.0 / jnp.sqrt(jnp.float32(F_in))
    x = jax.random.normal(kx, (B, T, F_in), dtype=jnp.float32)
    w = jax.random.uniform(kw, (F_in, F_out), jnp.float32, -bound, bound)
    b = jax.random.uniform(kb, (1, F_out), jnp.float32, -bound, bound)

    y = jax.block_until_ready(time_distributed_linear(x, w, b, force_pallas=True))
    assert y.shape == (B, T, F_out), y.shape
    assert jnp.allclose(y, _reference(x, w, b), atol=1e-5, rtol=1e-5), "small-case mismatch"

    # Case 2: big enough to hit the pipelined multi-tile path
    # (grid > 1, weight resident, lane-dense 256-wide output).
    B2, T2, F_in2, F_out2 = 4, 512, 128, 256
    bound2 = 1.0 / jnp.sqrt(jnp.float32(F_in2))
    xb = jax.random.normal(kx2, (B2, T2, F_in2), dtype=jnp.float32)
    wb = jax.random.uniform(kw2, (F_in2, F_out2), jnp.float32, -bound2, bound2)
    bb = jax.random.uniform(kb2, (1, F_out2), jnp.float32, -bound2, bound2)

    yb = jax.block_until_ready(time_distributed_linear(xb, wb, bb))
    assert yb.shape == (B2, T2, F_out2), yb.shape
    assert jnp.allclose(yb, _reference(xb, wb, bb), atol=1e-3, rtol=1e-3), "pipelined-case mismatch"

    print("KERNEL_OK")
</pallas_src>

<mosaic_0001>
module attributes {stable_mosaic.version = 11 : i64} {
  func.func @_td_linear_kernel(%arg0: i32, %arg1: memref<16x32xf32, #tpu.memory_space<vmem>>, %arg2: memref<32x128xf32, #tpu.memory_space<vmem>>, %arg3: memref<1x128xf32, #tpu.memory_space<vmem>>, %arg4: memref<16x128xf32, #tpu.memory_space<vmem>>) attributes {dimension_semantics = [#tpu.dimension_semantics<parallel>], iteration_bounds = array<i64: 1>, scalar_prefetch = 0 : i64, scratch_operands = 0 : i64, tpu.core_type = #tpu.core_type<tc>, window_params = [{transform_indices = @transform_0, window_bounds = array<i64: 16, 32>}, {pipeline_mode = #tpu.pipeline_mode<synchronous>, transform_indices = @transform_1, window_bounds = array<i64: 32, 128>}, {pipeline_mode = #tpu.pipeline_mode<synchronous>, transform_indices = @transform_2, window_bounds = array<i64: 1, 128>}, {transform_indices = @transform_3, window_bounds = array<i64: 16, 128>}]} {
    %c0 = arith.constant 0 : index
    %c0_0 = arith.constant 0 : index
    %0 = vector.load %arg1[%c0, %c0_0] : memref<16x32xf32, #tpu.memory_space<vmem>>, vector<16x32xf32>
    %c0_1 = arith.constant 0 : index
    %c0_2 = arith.constant 0 : index
    %1 = vector.load %arg2[%c0_1, %c0_2] : memref<32x128xf32, #tpu.memory_space<vmem>>, vector<32x128xf32>
    %cst = arith.constant dense<0.000000e+00> : vector<16x128xf32>
    %2 = tpu.matmul %0, %1, %cst {dimension_numbers = #tpu.dot_dimension_numbers<[1], [0], [0], [1], [0, 0, 1, 1], [], []>} : vector<16x32xf32>, vector<32x128xf32>, vector<16x128xf32> -> vector<16x128xf32>
    %c0_3 = arith.constant 0 : index
    %c0_4 = arith.constant 0 : index
    %3 = vector.load %arg3[%c0_3, %c0_4] : memref<1x128xf32, #tpu.memory_space<vmem>>, vector<1x128xf32>
    %4 = vector.broadcast %3 : vector<1x128xf32> to vector<16x128xf32>
    %5 = arith.addf %2, %4 : vector<16x128xf32>
    %c0_5 = arith.constant 0 : index
    %c0_6 = arith.constant 0 : index
    %6 = vector.load %arg4[%c0_5, %c0_6] : memref<16x128xf32, #tpu.memory_space<vmem>>, vector<16x128xf32>
    tpu.vector_store %arg4[%c0_5, %c0_6], %5 {strides = array<i32>} : memref<16x128xf32, #tpu.memory_space<vmem>>, vector<16x128xf32>,
    return
  }
  func.func @transform_0(%arg0: i32) -> (i32, i32) {
    %c0_i32 = arith.constant 0 : i32
    %c0_i32_0 = arith.constant 0 : i32
    return %arg0, %c0_i32 : i32, i32
  }
  func.func @transform_1(%arg0: i32) -> (i32, i32) {
    %c0_i32 = arith.constant 0 : i32
    %c0_i32_0 = arith.constant 0 : i32
    %c0_i32_1 = arith.constant 0 : i32
    return %c0_i32, %c0_i32_0 : i32, i32
  }
  func.func @transform_2(%arg0: i32) -> (i32, i32) {
    %c0_i32 = arith.constant 0 : i32
    %c0_i32_0 = arith.constant 0 : i32
    %c0_i32_1 = arith.constant 0 : i32
    return %c0_i32, %c0_i32_0 : i32, i32
  }
  func.func @transform_3(%arg0: i32) -> (i32, i32) {
    %c0_i32 = arith.constant 0 : i32
    %c0_i32_0 = arith.constant 0 : i32
    return %arg0, %c0_i32 : i32, i32
  }
}

</mosaic_0001>

<llo_original>
// kernel: time_distributed_linear.1
$region0: #{time_distributed_linear.1}
  #allocation0 [shape = 'u32[]', space=smem, size = 0x4, offset = 0x4, fixed_abs, tag = 'smem constant byte address 0x4 - core index']
  #allocation1 [shape = 'u32[144,128]{1,0:T(1,128)}', space=vmem, size = 0x12000, scoped, tag = 'internal scratch']
  %s0 = inlined_call_operand.vmem [shape: f32[16,32], index: 0, kind: input, shape index: {}]
  %s1 = inlined_call_operand.vmem [shape: f32[32,128], index: 1, kind: input, shape index: {}]
  %s2 = inlined_call_operand.vmem [shape: f32[1,128], index: 2, kind: input, shape index: {}]
  %s3 = inlined_call_operand.vmem [shape: f32[16,128], index: 3, kind: output, shape index: {}]
  %s4 = sld [smem:[#allocation0]]
  $region22: #{time_distributed_linear.1} parent=0
    _
  %s6 = ssub.s32 1, %s4
  %s7 = scalar_select 0, %s6, %s4
  // Predicated region
  $region2: #{time_distributed_linear.1} parent=0 // pred_check
    _
  $region3: #{time_distributed_linear.1} parent=0 // pred_check_branch
    %9 = sbr.rel (0) target = $region5
  $region4: #{time_distributed_linear.1} parent=0 // pred_region
    _
  $region5: #{time_distributed_linear.1} parent=0 // pred_fallthru
    _
  // Predicated region
  $region6: #{time_distributed_linear.1} parent=0 // pred_check
    _
  $region7: #{time_distributed_linear.1} parent=0 // pred_check_branch
    %11 = sbr.rel (0) target = $region9
  $region8: #{time_distributed_linear.1} parent=0 // pred_region
    _
  $region9: #{time_distributed_linear.1} parent=0 // pred_fallthru
    _
  // Predicated region
  $region10: #{time_distributed_linear.1} parent=0 // pred_check
    _
  $region11: #{time_distributed_linear.1} parent=0 // pred_check_branch
    %13 = sbr.rel (0) target = $region13
  $region12: #{time_distributed_linear.1} parent=0 // pred_region
    _
  $region13: #{time_distributed_linear.1} parent=0 // pred_fallthru
    _
  %v14 = vld [vmem:[%s0] sm:$0xff]
  %v15 = vld [vmem:[%s0 + $0x8] sm:$0xff]
  %v16 = vld [vmem:[%s1] sm:$0xff]
  %v17 = vld [vmem:[%s1 + $0x8] sm:$0xff]
  %v18 = vld [vmem:[%s1 + $0x10] sm:$0xff]
  %v19 = vld [vmem:[%s1 + $0x18] sm:$0xff]
  %v20 = vld [vmem:[%s2] sm:$0x1]
  %v22 = vlaneseq
  %v23 = vshrl.u32 %v22, 7
  %v24 = vsub.s32 0, %v23
  %v25 = vrot.slane %v20, %v24
  %vm27 = vcmask 261120
  %v29 = vsel %vm27, %v14, 0
  %v32 = vsel %vm27, %v15, 0
  %34 = vmatprep.subr.mxu0 0.0
  %35 = vmatpush1.msra.mxu0 0.0
  %36 = vmatprep.subr.mxu0 0.0
  %37 = vmatpush1.msra.mxu0 0.0
  %38 = vmatprep.subr.mxu0 0.0
  %39 = vmatpush1.msra.mxu0 0.0
  %40 = vmatprep.subr.mxu0 0.0
  %41 = vmatpush1.msra.mxu0 0.0
  %42 = vmatprep.subr.mxu0 0.0
  %43 = vmatpush1.msra.mxu0 0.0
  %44 = vmatprep.subr.mxu0 0.0
  %45 = vmatpush1.msra.mxu0 0.0
  %46 = vmatprep.subr.mxu0 0.0
  %47 = vmatpush1.msra.mxu0 0.0
  %48 = vmatprep.subr.mxu0 0.0
  %49 = vmatpush1.msra.mxu0 0.0
  %50 = vmatprep.subr.mxu0 0.0
  %51 = vmatpush1.msra.mxu0 0.0
  %52 = vmatprep.subr.mxu0 0.0
  %53 = vmatpush1.msra.mxu0 0.0
  %54 = vmatprep.subr.mxu0 0.0
  %55 = vmatpush1.msra.mxu0 0.0
  %56 = vmatprep.subr.mxu0 0.0
  %57 = vmatpush1.msra.mxu0 0.0
  %58 = vmatprep.subr.mxu0 0.0
  %59 = vmatpush1.msra.mxu0 %v19
  %60 = vmatprep.subr.mxu0 0.0
  %61 = vmatpush1.msra.mxu0 %v18
  %62 = vmatprep.subr.mxu0 0.0
  %63 = vmatpush1.msra.mxu0 %v17
  %64 = vmatprep.subr.mxu0 0.0
  %65 = vmatpush1.msra.mxu0 %v16
  %66 = vmatprep.subr.mxu0 0.0
  %67 = vmatpush2.msra.mxu0 0.0
  %68 = vmatprep.subr.mxu0 0.0
  %69 = vmatpush2.msra.mxu0 0.0
  %70 = vmatprep.subr.mxu0 0.0
  %71 = vmatpush2.msra.mxu0 0.0
  %72 = vmatprep.subr.mxu0 0.0
  %73 = vmatpush2.msra.mxu0 0.0
  %74 = vmatprep.subr.mxu0 0.0
  %75 = vmatpush2.msra.mxu0 0.0
  %76 = vmatprep.subr.mxu0 0.0
  %77 = vmatpush2.msra.mxu0 0.0
  %78 = vmatprep.subr.mxu0 0.0
  %79 = vmatpush2.msra.mxu0 0.0
  %80 = vmatprep.subr.mxu0 0.0
  %81 = vmatpush2.msra.mxu0 0.0
  %82 = vmatprep.subr.mxu0 0.0
  %83 = vmatpush2.msra.mxu0 0.0
  %84 = vmatprep.subr.mxu0 0.0
  %85 = vmatpush2.msra.mxu0 0.0
  %86 = vmatprep.subr.mxu0 0.0
  %87 = vmatpush2.msra.mxu0 0.0
  %88 = vmatprep.subr.mxu0 0.0
  %89 = vmatpush2.msra.mxu0 0.0
  %90 = vmatprep.subr.mxu0 0.0
  %91 = vmatpush2.msra.mxu0 0.0
  %92 = vmatprep.subr.mxu0 0.0
  %93 = vmatpush2.msra.mxu0 0.0
  %94 = vmatprep.subr.mxu0 0.0
  %95 = vmatpush2.msra.mxu0 0.0
  %96 = vmatprep.subr.mxu0 0.0
  %97 = vmatpush2.msra.mxu0 0.0
  %98 = vmatprep.mubr.f32.mxu0 0.0
  %99 = vmatmul.mubr.f32.gmra.mxu0 %v29
  %v100 = vpop.f32.mrf.mxu0
  %v101 = vadd.f32 %v25, %v100
  %v102 = vpop.f32.mrf.mxu0
  %103 = vmatprep.mubr.f32.mxu0 0.0
  %104 = vmatmul.mubr.f32.gmra.mxu0 %v32
  %v105 = vpop.f32.mrf.mxu0
  %v106 = vadd.f32 %v25, %v105
  %v107 = vpop.f32.mrf.mxu0
  %108 = vdwg.mxu0
  %109 = vst [vmem:[%s3] sm:$0xff] %v101
  %110 = vst [vmem:[%s3 + $0x8] sm:$0xff] %v106
  // Predicated region
  $region14: #{time_distributed_linear.1} parent=0 // pred_check
    _
  $region15: #{time_distributed_linear.1} parent=0 // pred_check_branch
    %112 = sbr.rel (0) target = $region17
  $region16: #{time_distributed_linear.1} parent=0 // pred_region
    _
  $region17: #{time_distributed_linear.1} parent=0 // pred_fallthru
    _
  // Predicated region
  $region18: #{time_distributed_linear.1} parent=0 // pred_check
    _
  $region19: #{time_distributed_linear.1} parent=0 // pred_check_branch
    %114 = sbr.rel (0) target = $region21
  $region20: #{time_distributed_linear.1} parent=0 // pred_region
    _
  $region21: #{time_distributed_linear.1} parent=0 // pred_fallthru
    _

</llo_original>
